<compile_context>
chip_gen: v7x
topology: tpu7x:2x2x1
jax: 0.10.0
libtpu: 0.0.40
codegen_flags: <defaults>
</compile_context>

<pallas_src>
import functools

import jax
import jax.numpy as jnp
from jax.experimental import pallas as pl
from jax.experimental.pallas import tpu as pltpu


def _round_up(x, m):
    return ((x + m - 1) // m) * m


def _cdiv(a, b):
    return -(-a // b)


def _scoped_vmem_limit_bytes():
    """Generation-aware scoped-VMEM budget (~3/4 of physical, capped at 96 MiB)."""
    phys = None
    try:
        info = pltpu.get_tpu_info()
        for name in ("vmem_capacity_bytes", "vmem_size_bytes", "vmem_bytes"):
            v = getattr(info, name, None)
            if isinstance(v, int) and v > 0:
                phys = v
                break
    except Exception:
        phys = None
    if phys is None:
        phys = 64 * 1024 * 1024          # v7x per-core physical VMEM (worst case)
    phys = max(phys, 16 * 1024 * 1024)
    return int(min(phys * 3 // 4, 96 * 1024 * 1024))


_VMEM_LIMIT = _scoped_vmem_limit_bytes()
_TILE_CAP_BYTES = 6 * 1024 * 1024        # per-tile f32 buffer cap (bigger tiles -> fewer steps)


def _plan(batch, fpad):
    """Static dispatch plan -> (fused, tile_b, num_tiles, resident)."""
    row_bytes = fpad * 4
    data_bytes = batch * row_bytes

    # Fused single-invocation path: whole batch (+ in/out buffers) in VMEM.
    if data_bytes * 5 <= _VMEM_LIMIT:
        return True, batch, 1, False

    tile_cap = max(8 * row_bytes, min(_TILE_CAP_BYTES, _VMEM_LIMIT // 6))
    tile_full = max(8, ((tile_cap // row_bytes) // 8) * 8)
    if tile_full >= batch:
        return True, batch, 1, False

    # Can the whole (padded) batch live in a VMEM staging scratch so `data`
    # is read from HBM exactly once?
    margin = 2 << 20
    stage_bytes_min = _round_up(batch, 8) * row_bytes
    if stage_bytes_min + margin + 4 * 8 * row_bytes <= _VMEM_LIMIT:
        tb_budget = (_VMEM_LIMIT - stage_bytes_min - margin) // (4 * row_bytes)
        tb = max(8, min(tile_full, (tb_budget // 8) * 8))
        num_tiles = _cdiv(batch, tb)
        if (num_tiles * tb + 4 * tb) * row_bytes + margin <= _VMEM_LIMIT:
            return False, tb, num_tiles, True

    return False, tile_full, _cdiv(batch, tile_full), False


# --------------------------------------------------------------------------- #
# Fused kernel: whole batch resident, single invocation (no grid).
# --------------------------------------------------------------------------- #
def _fused_kernel(
    data_ref, mean_ref, sumsq_ref, count_ref, clip_ref,
    out_ref, nmean_ref, nsumsq_ref, nvar_ref, nstd_ref, ncount_ref,
    *, batch,
):
    data = data_ref[...]                                        # (B, Fp)
    old_count = count_ref[0]
    new_count = old_count + jnp.int32(batch)

    rows_f = jnp.float32(batch)
    batch_mean = jnp.sum(data, axis=0, keepdims=True) * jnp.float32(1.0 / batch)
    centered = data - batch_mean
    batch_m2 = jnp.sum(centered * centered, axis=0, keepdims=True)

    # Chan merge with the running stats; count == 0 degenerates to the batch
    # statistics, i.e. the PyTorch "first push" branch.
    cnt_before = old_count.astype(jnp.float32)
    cnt_after = cnt_before + rows_f
    delta = batch_mean - mean_ref[...]
    new_mean = mean_ref[...] + delta * (rows_f / cnt_after)
    new_sumsq = sumsq_ref[...] + batch_m2 + delta * delta * (cnt_before * rows_f / cnt_after)

    # count == 1 guard: PyTorch computes 0/0 -> NaN here; the normalized output
    # is unaffected (raw passthrough below) and we keep var/std finite.
    denom = jnp.maximum(new_count - 1, 1).astype(jnp.float32)
    new_var = new_sumsq / denom
    new_std = jnp.maximum(jnp.sqrt(new_var), jnp.float32(0.01))
    inv_std = pl.reciprocal(new_std)
    offset = -new_mean * inv_std

    nmean_ref[...] = new_mean
    nsumsq_ref[...] = new_sumsq
    nvar_ref[...] = new_var
    nstd_ref[...] = new_std
    ncount_ref[0] = new_count

    clip_v = clip_ref[0]

    @pl.when(new_count <= 1)
    def _raw():
        out_ref[...] = data

    @pl.when(new_count > 1)
    def _norm():
        out_ref[...] = jnp.clip(data * inv_std + offset, -clip_v, clip_v)


# --------------------------------------------------------------------------- #
# Tiled two-phase kernel: grid = (phase, batch tile).
# --------------------------------------------------------------------------- #
def _tiled_kernel(
    data_ref, mean_ref, sumsq_ref, count_ref, clip_ref,
    out_ref, nmean_ref, nsumsq_ref, nvar_ref, nstd_ref, ncount_ref,
    acc_mean, acc_m2, inv_std, off_s, tmean_s, tm2_s, stage,
    *, batch, tile_b, resident,
):
    phase = pl.program_id(0)
    t = pl.program_id(1)
    num_tiles = pl.num_programs(1)
    rem = batch % tile_b                       # static python int
    new_count = count_ref[0] + jnp.int32(batch)

    # ---------------- phase 0: streaming Chan-merge of batch statistics ------
    @pl.when(phase == 0)
    def _stats():
        @pl.when(t == 0)
        def _init():
            # Start the merge from the old running stats (count == 0 reduces
            # to the plain batch statistics -> PyTorch first-push branch).
            acc_mean[...] = mean_ref[...]
            acc_m2[...] = sumsq_ref[...]

        data = data_ref[...]                                    # (tile_b, Fp)

        if resident:
            # Stage the tile so phase 1 never re-reads `data` from HBM.
            row0 = pl.multiple_of(t * tile_b, 8)
            stage[pl.ds(row0, tile_b), :] = data

        if rem == 0:
            rows_f = jnp.float32(tile_b)
            tile_mean = jnp.sum(data, axis=0, keepdims=True) * jnp.float32(1.0 / tile_b)
            centered = data - tile_mean
            tile_m2 = jnp.sum(centered * centered, axis=0, keepdims=True)
        else:
            # Only the last (partial) tile pays for the row mask.
            is_last = t == num_tiles - 1

            @pl.when(jnp.logical_not(is_last))
            def _full_tile():
                tm = jnp.sum(data, axis=0, keepdims=True) * jnp.float32(1.0 / tile_b)
                c = data - tm
                tmean_s[...] = tm
                tm2_s[...] = jnp.sum(c * c, axis=0, keepdims=True)

            @pl.when(is_last)
            def _partial_tile():
                row_ids = jax.lax.broadcasted_iota(jnp.int32, (tile_b, 1), 0)
                valid = row_ids < rem
                tm = jnp.sum(jnp.where(valid, data, 0.0), axis=0, keepdims=True) \
                    * jnp.float32(1.0 / rem)
                c = jnp.where(valid, data - tm, 0.0)
                tmean_s[...] = tm
                tm2_s[...] = jnp.sum(c * c, axis=0, keepdims=True)

            rows_f = jnp.where(is_last, jnp.float32(rem), jnp.float32(tile_b))
            tile_mean = tmean_s[...]
            tile_m2 = tm2_s[...]

        # Chan / parallel-variance merge of this tile into the running stats.
        # (counts carried in f32: exactness degrades past ~2^24 total samples)
        cnt_before = (count_ref[0] + t * tile_b).astype(jnp.float32)
        cnt_after = cnt_before + rows_f
        delta = tile_mean - acc_mean[...]
        acc_mean[...] = acc_mean[...] + delta * (rows_f / cnt_after)
        acc_m2[...] = acc_m2[...] + tile_m2 + delta * delta * (cnt_before * rows_f / cnt_after)

        @pl.when(t == num_tiles - 1)
        def _finalize():
            # Tiled path only runs when batch > tile_b >= 8, so new_count >= 2;
            # the max() is just a cheap safety net.
            denom = jnp.maximum(new_count - 1, 1).astype(jnp.float32)
            new_var = acc_m2[...] / denom
            new_std = jnp.maximum(jnp.sqrt(new_var), jnp.float32(0.01))
            inv = pl.reciprocal(new_std)          # F reciprocals, not B*F divides
            nmean_ref[...] = acc_mean[...]
            nsumsq_ref[...] = acc_m2[...]
            nvar_ref[...] = new_var
            nstd_ref[...] = new_std
            ncount_ref[0] = new_count
            inv_std[...] = inv
            off_s[...] = -acc_mean[...] * inv

    # ---------------- phase 1: normalize with the merged statistics ----------
    @pl.when(phase == 1)
    def _normalize():
        if resident:
            row0 = pl.multiple_of(t * tile_b, 8)
            data = stage[pl.ds(row0, tile_b), :]
        else:
            data = data_ref[...]
        clip_v = clip_ref[0]
        # new_count > 1 is guaranteed on this path (see _finalize); the raw
        # passthrough only exists in the fused kernel.
        out_ref[...] = jnp.clip(data * inv_std[...] + off_s[...], -clip_v, clip_v)


# --------------------------------------------------------------------------- #
# Wrapper
# --------------------------------------------------------------------------- #
@functools.partial(
    jax.jit,
    static_argnames=("fused", "tile_b", "num_tiles", "resident"),
    donate_argnums=(1, 2),
)
def _normalizer_step(data, mean, sumsq, count, clip, *, fused, tile_b, num_tiles, resident):
    """One Normalizer.forward() on feature-padded data.

    data: (B, Fp) f32, Fp a multiple of 128 (or the true F).  mean/sumsq:
    (1, Fp) running stats (donated, aliased -> updated in place).  count: (1,)
    i32.  clip: (1,) f32.  Returns (out, new_mean, new_sumsq, new_var, new_std,
    new_count).
    """
    b, fp = data.shape
    out_shapes = (
        jax.ShapeDtypeStruct((b, fp), jnp.float32),   # normalized output
        jax.ShapeDtypeStruct((1, fp), jnp.float32),   # new mean
        jax.ShapeDtypeStruct((1, fp), jnp.float32),   # new sumsq
        jax.ShapeDtypeStruct((1, fp), jnp.float32),   # new var
        jax.ShapeDtypeStruct((1, fp), jnp.float32),   # new std
        jax.ShapeDtypeStruct((1,), jnp.int32),        # new count
    )
    vmem = pltpu.MemorySpace.VMEM
    smem = pltpu.MemorySpace.SMEM

    if fused:
        kernel = functools.partial(_fused_kernel, batch=b)
        return pl.pallas_call(
            kernel,
            out_shape=out_shapes,
            in_specs=[
                pl.BlockSpec(memory_space=vmem),
                pl.BlockSpec(memory_space=vmem),
                pl.BlockSpec(memory_space=vmem),
                pl.BlockSpec(memory_space=smem),
                pl.BlockSpec(memory_space=smem),
            ],
            out_specs=[
                pl.BlockSpec(memory_space=vmem),
                pl.BlockSpec(memory_space=vmem),
                pl.BlockSpec(memory_space=vmem),
                pl.BlockSpec(memory_space=vmem),
                pl.BlockSpec(memory_space=vmem),
                pl.BlockSpec(memory_space=smem),
            ],
            input_output_aliases={1: 1, 2: 2},        # mean->new_mean, sumsq->new_sumsq
            compiler_params=pltpu.CompilerParams(vmem_limit_bytes=_VMEM_LIMIT),
        )(data, mean, sumsq, count, clip)

    # Tiled two-phase path.
    kernel = functools.partial(_tiled_kernel, batch=b, tile_b=tile_b, resident=resident)

    row = lambda p, t: (0, 0)
    # Park the output on block 0 during the stats phase so no garbage block is
    # ever written back and no block is revisited non-consecutively.
    out_tile = lambda p, t: (p * t, 0)
    if resident:
        # During phase 1 the data index stays parked on the last phase-0 block
        # -> no second HBM read of `data`; phase 1 reads the staging scratch.
        data_tile = lambda p, t: (t * (1 - p) + (num_tiles - 1) * p, 0)
        stage_rows = num_tiles * tile_b
    else:
        data_tile = lambda p, t: (t, 0)
        stage_rows = 8                                # unused dummy scratch

    return pl.pallas_call(
        kernel,
        out_shape=out_shapes,
        grid=(2, num_tiles),                          # (phase, batch tile)
        in_specs=[
            pl.BlockSpec((tile_b, fp), data_tile),
            pl.BlockSpec((1, fp), row),
            pl.BlockSpec((1, fp), row),
            pl.BlockSpec(memory_space=smem),
            pl.BlockSpec(memory_space=smem),
        ],
        out_specs=[
            pl.BlockSpec((tile_b, fp), out_tile),
            pl.BlockSpec((1, fp), row),
            pl.BlockSpec((1, fp), row),
            pl.BlockSpec((1, fp), row),
            pl.BlockSpec((1, fp), row),
            pl.BlockSpec(memory_space=smem),
        ],
        scratch_shapes=[
            pltpu.VMEM((1, fp), jnp.float32),          # acc_mean
            pltpu.VMEM((1, fp), jnp.float32),          # acc_m2
            pltpu.VMEM((1, fp), jnp.float32),          # 1 / new_std
            pltpu.VMEM((1, fp), jnp.float32),          # -new_mean / new_std
            pltpu.VMEM((1, fp), jnp.float32),          # per-tile mean (mask gating)
            pltpu.VMEM((1, fp), jnp.float32),          # per-tile m2
            pltpu.VMEM((stage_rows, fp), jnp.float32),  # full-batch staging scratch
        ],
        input_output_aliases={1: 1, 2: 2},
        compiler_params=pltpu.CompilerParams(
            dimension_semantics=("arbitrary", "arbitrary"),
            vmem_limit_bytes=_VMEM_LIMIT,
        ),
    )(data, mean, sumsq, count, clip)


class NormalizerPallas:
    """Stateful wrapper mirroring omnisafe's Normalizer for 1-D feature shapes."""

    def __init__(self, shape, clip: float = 1e6, _force_tiling=None):
        assert len(shape) == 1, "this kernel handles 1-D feature shapes"
        (f,) = shape
        self._shape = tuple(shape)
        self._f = f
        self._fp = _round_up(f, 128)                  # lane-dense feature axis
        self._mean_p = jnp.zeros((1, self._fp), jnp.float32)
        self._sumsq_p = jnp.zeros((1, self._fp), jnp.float32)
        self._var_p = jnp.zeros((1, self._fp), jnp.float32)
        self._std_p = jnp.zeros((1, self._fp), jnp.float32)
        self._count = jnp.zeros((1,), jnp.int32)
        self._clip_val = jnp.full((1,), clip, jnp.float32)
        self._force_tiling = _force_tiling            # (tile_b, resident): test hook

    # public (unpadded) views of the running state
    @property
    def shape(self):
        return self._shape

    @property
    def mean(self):
        return self._mean_p[0, : self._f]

    @property
    def std(self):
        return self._std_p[0, : self._f]

    @property
    def var(self):
        return self._var_p[0, : self._f]

    @property
    def sumsq(self):
        return self._sumsq_p[0, : self._f]

    @property
    def count(self):
        return self._count[0]

    def forward(self, data):
        data = jnp.asarray(data, jnp.float32)
        if data.shape == self._shape:                 # unsqueeze(0) semantics
            data = data[None, :]
        assert data.shape[1:] == self._shape, "data shape must be (batch, *shape)"
        if self._fp != self._f:                       # pad features to multiple of 128
            data = jnp.pad(data, ((0, 0), (0, self._fp - self._f)))
        b = data.shape[0]
        if self._force_tiling is not None:
            tb, resident = self._force_tiling
            fused, tile_b, num_tiles = False, tb, _cdiv(b, tb)
        else:
            fused, tile_b, num_tiles, resident = _plan(b, self._fp)
        (out, self._mean_p, self._sumsq_p, self._var_p, self._std_p,
         self._count) = _normalizer_step(
            data, self._mean_p, self._sumsq_p, self._count, self._clip_val,
            fused=fused, tile_b=tile_b, num_tiles=num_tiles, resident=resident)
        return out[:, : self._f]

    __call__ = forward


# ------------------------- plain-JAX reference --------------------------------
def _reference(datas, clip_val):
    """Replay the PyTorch Normalizer in plain JAX (same formulas)."""
    mean = sumsq = None
    count = 0
    first = True
    outs = []
    for d in datas:
        d = jnp.asarray(d, jnp.float32)
        if d.ndim == 1:
            d = d[None, :]
        if first:
            mean = jnp.mean(d, axis=0)
            sumsq = jnp.sum((d - mean) ** 2, axis=0)
            count = d.shape[0]
            first = False
        else:
            cr = d.shape[0]
            new_count = count + cr
            mr = jnp.mean(d, axis=0)
            delta = mr - mean
            mean = mean + delta * cr / new_count
            sq = jnp.sum((d - mr) ** 2, axis=0)
            sumsq = sumsq + sq + delta ** 2 * count * cr / new_count
            count = new_count
        var = sumsq / max(count - 1, 1)
        std = jnp.maximum(jnp.sqrt(var), 0.01)
        if count <= 1:
            outs.append(d)
        else:
            outs.append(jnp.clip((d - mean) / std, -clip_val, clip_val))
    return outs, mean, std


if __name__ == "__main__":
    key = jax.random.PRNGKey(0)
    k = jax.random.split(key, 6)
    F = 32
    clip = 1e6

    # --- fused path (typical tiny RL batch) -----------------------------------
    B = 8
    x1 = jax.random.normal(k[0], (B, F), jnp.float32) * 2.0 + 1.5
    x2 = jax.random.normal(k[1], (B, F), jnp.float32) * 0.5 - 0.3
    norm = NormalizerPallas((F,), clip=clip)
    y1 = norm(x1)                         # first push (count == 0 path)
    y2 = norm(x2)                         # running-update path
    jax.block_until_ready((y1, y2, norm.mean, norm.std, norm.count))
    (r1, r2), ref_mean, ref_std = _reference([x1, x2], clip)
    assert jnp.allclose(y1, r1, atol=1e-4, rtol=1e-4)
    assert jnp.allclose(y2, r2, atol=1e-4, rtol=1e-4)
    assert jnp.allclose(norm.mean, ref_mean, atol=1e-4, rtol=1e-4)
    assert jnp.allclose(norm.std, ref_std, atol=1e-4, rtol=1e-4)
    assert int(norm.count) == 2 * B

    # --- count == 1 edge case: raw passthrough, finite var/std -----------------
    single = NormalizerPallas((F,), clip=clip)
    x0 = jax.random.normal(k[2], (F,), jnp.float32)
    y0 = single(x0)
    jax.block_until_ready(y0)
    assert jnp.allclose(y0[0], x0, atol=1e-6)
    assert bool(jnp.all(jnp.isfinite(single.std)))

    # --- tiled two-phase path (tiles forced small so it runs at test size) -----
    xa = jax.random.normal(k[3], (40, F), jnp.float32) * 3.0 - 1.0   # rem == 0
    xb = jax.random.normal(k[4], (44, F), jnp.float32) * 0.7 + 2.0   # rem == 4
    (ra, rb), tref_mean, tref_std = _reference([xa, xb], clip)
    for resident in (True, False):
        tnorm = NormalizerPallas((F,), clip=clip, _force_tiling=(8, resident))
        ya = tnorm(xa)
        yb = tnorm(xb)
        jax.block_until_ready((ya, yb, tnorm.mean, tnorm.std))
        assert jnp.allclose(ya, ra, atol=1e-4, rtol=1e-4), resident
        assert jnp.allclose(yb, rb, atol=1e-4, rtol=1e-4), resident
        assert jnp.allclose(tnorm.mean, tref_mean, atol=1e-4, rtol=1e-4), resident
        assert jnp.allclose(tnorm.std, tref_std, atol=1e-4, rtol=1e-4), resident
        assert int(tnorm.count) == 84

    print("KERNEL_OK")
</pallas_src>

<mosaic_0001>
module attributes {stable_mosaic.version = 11 : i64} {
  func.func @_fused_kernel(%arg0: memref<8x128xf32, #tpu.memory_space<vmem>>, %arg1: memref<1x128xf32, #tpu.memory_space<vmem>>, %arg2: memref<1x128xf32, #tpu.memory_space<vmem>>, %arg3: memref<1xi32, #tpu.memory_space<smem>>, %arg4: memref<1xf32, #tpu.memory_space<smem>>, %arg5: memref<8x128xf32, #tpu.memory_space<vmem>>, %arg6: memref<1x128xf32, #tpu.memory_space<vmem>>, %arg7: memref<1x128xf32, #tpu.memory_space<vmem>>, %arg8: memref<1x128xf32, #tpu.memory_space<vmem>>, %arg9: memref<1x128xf32, #tpu.memory_space<vmem>>, %arg10: memref<1xi32, #tpu.memory_space<smem>>) attributes {dimension_semantics = [], scalar_prefetch = 0 : i64, scratch_operands = 0 : i64, tpu.core_type = #tpu.core_type<tc>} {
    %c0 = arith.constant 0 : index
    %c0_0 = arith.constant 0 : index
    %0 = vector.load %arg0[%c0, %c0_0] : memref<8x128xf32, #tpu.memory_space<vmem>>, vector<8x128xf32>
    %c0_1 = arith.constant 0 : index
    %1 = memref.load %arg3[%c0_1] : memref<1xi32, #tpu.memory_space<smem>>
    %c8_i32 = arith.constant 8 : i32
    %2 = arith.addi %1, %c8_i32 : i32
    %cst = arith.constant dense<0.000000e+00> : vector<128xf32>
    %3 = vector.multi_reduction <add>, %0, %cst [0] : vector<8x128xf32> to vector<128xf32>
    %4 = vector.shape_cast %3 : vector<128xf32> to vector<1x128xf32>
    %cst_2 = arith.constant 1.250000e-01 : f32
    %5 = vector.broadcast %cst_2 : f32 to vector<1x128xf32>
    %6 = arith.mulf %4, %5 : vector<1x128xf32>
    %7 = vector.broadcast %6 : vector<1x128xf32> to vector<8x128xf32>
    %8 = arith.subf %0, %7 : vector<8x128xf32>
    %9 = arith.mulf %8, %8 : vector<8x128xf32>
    %cst_3 = arith.constant dense<0.000000e+00> : vector<128xf32>
    %10 = vector.multi_reduction <add>, %9, %cst_3 [0] : vector<8x128xf32> to vector<128xf32>
    %11 = vector.shape_cast %10 : vector<128xf32> to vector<1x128xf32>
    %12 = arith.sitofp %1 : i32 to f32
    %cst_4 = arith.constant 8.000000e+00 : f32
    %13 = arith.addf %12, %cst_4 : f32
    %c0_5 = arith.constant 0 : index
    %c0_6 = arith.constant 0 : index
    %14 = vector.load %arg1[%c0_5, %c0_6] : memref<1x128xf32, #tpu.memory_space<vmem>>, vector<1x128xf32>
    %15 = arith.subf %6, %14 : vector<1x128xf32>
    %c0_7 = arith.constant 0 : index
    %c0_8 = arith.constant 0 : index
    %16 = vector.load %arg1[%c0_7, %c0_8] : memref<1x128xf32, #tpu.memory_space<vmem>>, vector<1x128xf32>
    %cst_9 = arith.constant 8.000000e+00 : f32
    %17 = arith.divf %cst_9, %13 : f32
    %18 = vector.broadcast %17 : f32 to vector<1x128xf32>
    %19 = arith.mulf %15, %18 : vector<1x128xf32>
    %20 = arith.addf %16, %19 : vector<1x128xf32>
    %c0_10 = arith.constant 0 : index
    %c0_11 = arith.constant 0 : index
    %21 = vector.load %arg2[%c0_10, %c0_11] : memref<1x128xf32, #tpu.memory_space<vmem>>, vector<1x128xf32>
    %22 = arith.addf %21, %11 : vector<1x128xf32>
    %23 = arith.mulf %15, %15 : vector<1x128xf32>
    %cst_12 = arith.constant 8.000000e+00 : f32
    %24 = arith.mulf %12, %cst_12 : f32
    %25 = arith.divf %24, %13 : f32
    %26 = vector.broadcast %25 : f32 to vector<1x128xf32>
    %27 = arith.mulf %23, %26 : vector<1x128xf32>
    %28 = arith.addf %22, %27 : vector<1x128xf32>
    %c1_i32 = arith.constant 1 : i32
    %29 = arith.subi %2, %c1_i32 : i32
    %c1_i32_13 = arith.constant 1 : i32
    %30 = arith.maxsi %29, %c1_i32_13 : i32
    %31 = arith.sitofp %30 : i32 to f32
    %32 = vector.broadcast %31 : f32 to vector<1x128xf32>
    %33 = arith.divf %28, %32 : vector<1x128xf32>
    %34 = math.sqrt %33 : vector<1x128xf32>
    %cst_14 = arith.constant 0.00999999977 : f32
    %35 = vector.broadcast %cst_14 : f32 to vector<1x128xf32>
    %36 = arith.maximumf %34, %35 : vector<1x128xf32>
    %37 = tpu.reciprocal %36 : vector<1x128xf32> -> vector<1x128xf32>
    %cst_15 = arith.constant 0.000000e+00 : f32
    %38 = vector.broadcast %cst_15 : f32 to vector<1x128xf32>
    %39 = arith.subf %38, %20 : vector<1x128xf32>
    %40 = arith.mulf %39, %37 : vector<1x128xf32>
    %c0_16 = arith.constant 0 : index
    %c0_17 = arith.constant 0 : index
    %41 = vector.load %arg6[%c0_16, %c0_17] : memref<1x128xf32, #tpu.memory_space<vmem>>, vector<1x128xf32>
    tpu.vector_store %arg6[%c0_16, %c0_17], %20 {strides = array<i32>} : memref<1x128xf32, #tpu.memory_space<vmem>>, vector<1x128xf32>,
    %c0_18 = arith.constant 0 : index
    %c0_19 = arith.constant 0 : index
    %42 = vector.load %arg7[%c0_18, %c0_19] : memref<1x128xf32, #tpu.memory_space<vmem>>, vector<1x128xf32>
    tpu.vector_store %arg7[%c0_18, %c0_19], %28 {strides = array<i32>} : memref<1x128xf32, #tpu.memory_space<vmem>>, vector<1x128xf32>,
    %c0_20 = arith.constant 0 : index
    %c0_21 = arith.constant 0 : index
    %43 = vector.load %arg8[%c0_20, %c0_21] : memref<1x128xf32, #tpu.memory_space<vmem>>, vector<1x128xf32>
    tpu.vector_store %arg8[%c0_20, %c0_21], %33 {strides = array<i32>} : memref<1x128xf32, #tpu.memory_space<vmem>>, vector<1x128xf32>,
    %c0_22 = arith.constant 0 : index
    %c0_23 = arith.constant 0 : index
    %44 = vector.load %arg9[%c0_22, %c0_23] : memref<1x128xf32, #tpu.memory_space<vmem>>, vector<1x128xf32>
    tpu.vector_store %arg9[%c0_22, %c0_23], %36 {strides = array<i32>} : memref<1x128xf32, #tpu.memory_space<vmem>>, vector<1x128xf32>,
    %c0_24 = arith.constant 0 : index
    %45 = memref.load %arg10[%c0_24] : memref<1xi32, #tpu.memory_space<smem>>
    memref.store %2, %arg10[%c0_24] : memref<1xi32, #tpu.memory_space<smem>>
    %c0_25 = arith.constant 0 : index
    %46 = memref.load %arg4[%c0_25] : memref<1xf32, #tpu.memory_space<smem>>
    %c1_i32_26 = arith.constant 1 : i32
    %47 = arith.cmpi sle, %2, %c1_i32_26 : i32
    %48 = arith.extui %47 : i1 to i32
    %c0_i32 = arith.constant 0 : i32
    %49 = arith.cmpi ne, %48, %c0_i32 : i32
    scf.if %49 {
      %c0_29 = arith.constant 0 : index
      %c0_30 = arith.constant 0 : index
      %53 = vector.load %arg5[%c0_29, %c0_30] : memref<8x128xf32, #tpu.memory_space<vmem>>, vector<8x128xf32>
      tpu.vector_store %arg5[%c0_29, %c0_30], %0 {strides = array<i32>} : memref<8x128xf32, #tpu.memory_space<vmem>>, vector<8x128xf32>,
    } else {
    }
    %c1_i32_27 = arith.constant 1 : i32
    %50 = arith.cmpi sgt, %2, %c1_i32_27 : i32
    %51 = arith.extui %50 : i1 to i32
    %c0_i32_28 = arith.constant 0 : i32
    %52 = arith.cmpi ne, %51, %c0_i32_28 : i32
    scf.if %52 {
      %53 = vector.broadcast %37 : vector<1x128xf32> to vector<8x128xf32>
      %54 = arith.mulf %0, %53 : vector<8x128xf32>
      %55 = vector.broadcast %40 : vector<1x128xf32> to vector<8x128xf32>
      %56 = arith.addf %54, %55 : vector<8x128xf32>
      %cst_29 = arith.constant 0.000000e+00 : f32
      %57 = arith.subf %cst_29, %46 : f32
      %58 = vector.broadcast %57 : f32 to vector<8x128xf32>
      %59 = arith.maximumf %58, %56 : vector<8x128xf32>
      %60 = vector.broadcast %46 : f32 to vector<8x128xf32>
      %61 = arith.minimumf %60, %59 : vector<8x128xf32>
      %c0_30 = arith.constant 0 : index
      %c0_31 = arith.constant 0 : index
      %62 = vector.load %arg5[%c0_30, %c0_31] : memref<8x128xf32, #tpu.memory_space<vmem>>, vector<8x128xf32>
      tpu.vector_store %arg5[%c0_30, %c0_31], %61 {strides = array<i32>} : memref<8x128xf32, #tpu.memory_space<vmem>>, vector<8x128xf32>,
    } else {
    }
    return
  }
}

</mosaic_0001>

<llo_original>
// kernel: _normalizer_step.1
$region0: #{_normalizer_step.1}
  #allocation0 [shape = 'u32[]', space=smem, size = 0x4, offset = 0x4, fixed_abs, tag = 'smem constant byte address 0x4 - core index']
  #allocation1 [shape = 'u32[144,128]{1,0:T(1,128)}', space=vmem, size = 0x12000, scoped, tag = 'internal scratch']
  #allocation2 [shape = 's32[1]{0:T(128)S(6)}', space=smem, size = 0x200, scoped, tag = 'scoped memory for _normalizer_step.1']
  #allocation3 [shape = 'f32[1]{0:T(128)S(6)}', space=smem, size = 0x200, scoped, tag = 'scoped memory for _normalizer_step.1']
  %s0 = inlined_call_operand.hbm [shape: f32[8,128], index: 0, kind: input, shape index: {}]
  %s1 = inlined_call_operand.hbm [shape: f32[1,128], index: 1, kind: input, shape index: {}, may-alias: {1,6}]
  %s2 = inlined_call_operand.hbm [shape: f32[1,128], index: 2, kind: input, shape index: {}, may-alias: {2,7}]
  %s3 = inlined_call_operand.<no memory space> [shape: s32[1], index: 3, kind: input, shape index: {}]
  %s4 = inlined_call_operand.<no memory space> [shape: f32[1], index: 4, kind: input, shape index: {}]
  %s5 = inlined_call_operand.hbm [shape: f32[8,128], index: 5, kind: output, shape index: {0}]
  %s6 = inlined_call_operand.hbm [shape: f32[1,128], index: 6, kind: output, shape index: {1}, may-alias: {1,6}]
  %s7 = inlined_call_operand.hbm [shape: f32[1,128], index: 7, kind: output, shape index: {2}, may-alias: {2,7}]
  %s8 = inlined_call_operand.hbm [shape: f32[1,128], index: 8, kind: output, shape index: {3}]
  %s9 = inlined_call_operand.hbm [shape: f32[1,128], index: 9, kind: output, shape index: {4}]
  %s10 = inlined_call_operand.hbm [shape: s32[1], index: 10, kind: output, shape index: {5}]
  %11 = xla_tuple %s5, %s6, %s7, %s8, %s9, %s10
  %s12 = sld [smem:[#allocation0]]
  $region90: #{_normalizer_step.1} parent=0
    _
  %s14 = ssub.s32 1, %s12
  %s15 = scalar_select 0, %s14, %s12
  %16 = sst [smem:[#allocation2]] %s3
  %17 = sst [smem:[#allocation3]] %s4
  $region1: #{_normalizer_step.1} parent=0
    #allocation4 [shape = 'u8[4096]{0}', space=vmem, size = 0x1000, scoped, tag = 'input window, operand 0, single buffered']
    #allocation5 [shape = 's32[1]{0}', space=sflag, size = 0x4, scoped, tag = 'scoped memory for _normalizer_step.1']
    #allocation6 [shape = 's32[1]{0}', space=sflag, size = 0x4, scoped, tag = 'scoped memory for _normalizer_step.1']
    #allocation7 [shape = 's32[1]{0}', space=sflag, size = 0x4, scoped, tag = 'scoped memory for _normalizer_step.1']
    #allocation8 [shape = 'u8[512]{0}', space=vmem, size = 0x400, scoped, tag = 'input window, operand 1, single buffered']
    #allocation9 [shape = 's32[1]{0}', space=sflag, size = 0x4, scoped, tag = 'scoped memory for _normalizer_step.1']
    #allocation10 [shape = 'u8[512]{0}', space=vmem, size = 0x400, scoped, tag = 'input window, operand 2, single buffered']
    #allocation11 [shape = 'u8[4096]{0}', space=vmem, size = 0x1000, scoped, tag = 'output window, operand 0, single buffered']
    #allocation12 [shape = 'u8[512]{0}', space=vmem, size = 0x400, scoped, tag = 'output window, operand 1, single buffered']
    #allocation13 [shape = 's32[1]{0}', space=sflag, size = 0x4, scoped, tag = 'scoped memory for _normalizer_step.1']
    #allocation14 [shape = 'u8[512]{0}', space=vmem, size = 0x400, scoped, tag = 'output window, operand 2, single buffered']
    #allocation15 [shape = 'u8[512]{0}', space=vmem, size = 0x400, scoped, tag = 'output window, operand 3, single buffered']
    #allocation16 [shape = 's32[1]{0}', space=sflag, size = 0x4, scoped, tag = 'scoped memory for _normalizer_step.1']
    #allocation17 [shape = 'u8[512]{0}', space=vmem, size = 0x400, scoped, tag = 'output window, operand 4, single buffered']
    #allocation18 [shape = 'u8[512]{0}', space=smem, size = 0x200, scoped, tag = 'output window, operand 5, single buffered']
    %18 = vsyncpa [#allocation5], 0
    %19 = vsyncpa [#allocation9], 0
    %20 = vsyncpa [#allocation6], 0
    %21 = vsyncpa [#allocation13], 0
    %22 = vsyncpa [#allocation16], 0
    %23 = vsyncpa [#allocation7], 0
    // Predicated region
    $region2: #{_normalizer_step.1} parent=1 // pred_check
      _
    $region3: #{_normalizer_step.1} parent=1 // pred_check_branch
      %25 = sbr.rel (0) target = $region5
    $region4: #{_normalizer_step.1} parent=1 // pred_region
      %s27 = ssub.s32 128, 128
      %28 = vsyncadd [#allocation5], %s27
      %s30 = sshll.u32 [#allocation4], 4
      %s31 = int_to_ptr.vmem [resolvable:$true] %s30
      %33 = dma.hbm_to_vmem [thread:$0]  %s0, 128, %s31, [#allocation5]
    $region5: #{_normalizer_step.1} parent=1 // pred_fallthru
      _
    // Predicated region
    $region6: #{_normalizer_step.1} parent=1 // pred_check
      _
    $region7: #{_normalizer_step.1} parent=1 // pred_check_branch
      %35 = sbr.rel (0) target = $region9
    $region8: #{_normalizer_step.1} parent=1 // pred_region
      %s37 = ssub.s32 16, 16
      %38 = vsyncadd [#allocation9], %s37
      %s40 = sshll.u32 [#allocation8], 4
      %s41 = int_to_ptr.vmem [resolvable:$true] %s40
      %43 = dma.hbm_to_vmem [thread:$0]  %s1, 16, %s41, [#allocation9]
    $region9: #{_normalizer_step.1} parent=1 // pred_fallthru
      _
    // Predicated region
    $region10: #{_normalizer_step.1} parent=1 // pred_check
      _
    $region11: #{_normalizer_step.1} parent=1 // pred_check_branch
      %45 = sbr.rel (0) target = $region13
    $region12: #{_normalizer_step.1} parent=1 // pred_region
      %s47 = ssub.s32 16, 16
      %48 = vsyncadd [#allocation9], %s47
      %s50 = sshll.u32 [#allocation10], 4
      %s51 = int_to_ptr.vmem [resolvable:$true] %s50
      %53 = dma.hbm_to_vmem [thread:$0]  %s2, 16, %s51, [#allocation9]
    $region13: #{_normalizer_step.1} parent=1 // pred_fallthru
      _
    // Predicated region
    $region14: #{_normalizer_step.1} parent=1 // pred_check
      _
    $region15: #{_normalizer_step.1} parent=1 // pred_check_branch
      %55 = sbr.rel (0) target = $region17
    $region16: #{_normalizer_step.1} parent=1 // pred_region
      _
    $region17: #{_normalizer_step.1} parent=1 // pred_fallthru
      _
    // Predicated region
    $region18: #{_normalizer_step.1} parent=1 // pred_check
      _
    $region19: #{_normalizer_step.1} parent=1 // pred_check_branch
      %57 = sbr.rel (0) target = $region21
    $region20: #{_normalizer_step.1} parent=1 // pred_region
      _
    $region21: #{_normalizer_step.1} parent=1 // pred_fallthru
      _
    // Predicated region
    $region22: #{_normalizer_step.1} parent=1 // pred_check
      _
    $region23: #{_normalizer_step.1} parent=1 // pred_check_branch
      %59 = sbr.rel (0) target = $region25
    $region24: #{_normalizer_step.1} parent=1 // pred_region
      %60 = dma.done [#allocation5], 128
    $region25: #{_normalizer_step.1} parent=1 // pred_fallthru
      _
    // Predicated region
    $region26: #{_normalizer_step.1} parent=1 // pred_check
      _
    $region27: #{_normalizer_step.1} parent=1 // pred_check_branch
      %62 = sbr.rel (0) target = $region29
    $region28: #{_normalizer_step.1} parent=1 // pred_region
      %63 = dma.done [#allocation9], 16
    $region29: #{_normalizer_step.1} parent=1 // pred_fallthru
      _
    // Predicated region
    $region30: #{_normalizer_step.1} parent=1 // pred_check
      _
    $region31: #{_normalizer_step.1} parent=1 // pred_check_branch
      %65 = sbr.rel (0) target = $region33
    $region32: #{_normalizer_step.1} parent=1 // pred_region
      %66 = dma.done [#allocation9], 16
    $region33: #{_normalizer_step.1} parent=1 // pred_fallthru
      _
    %v67 = vld [vmem:[#allocation4] sm:$0xff]
    %s68 = sld [smem:[#allocation2]]
    %s69 = sadd.s32 %s68, 8
    %v70 = vrot.slane %v67, 4
    %v71 = vadd.f32 %v67, %v70
    %v72 = vrot.slane %v71, 2
    %v73 = vadd.f32 %v71, %v72
    %v74 = vrot.slane %v73, 1
    %v75 = vadd.f32 %v73, %v74
    %v76 = vmul.f32 %v75, 0.125
    %v77 = vsub.f32 %v67, %v76
    %v78 = vmul.f32 %v77, %v77
    %v79 = vrot.slane %v78, 4
    %v80 = vadd.f32 %v78, %v79
    %v81 = vrot.slane %v80, 2
    %v82 = vadd.f32 %v80, %v81
    %v83 = vrot.slane %v82, 1
    %v84 = vadd.f32 %v82, %v83
    %s85 = scvt.s32.f32 %s68
    %s86 = sadd.f32 %s85, 8.0
    %v87 = vld [vmem:[#allocation8] sm:$0x1]
    %v88 = vsub.f32 %v76, %v87
    %v89 = vstv %s86
    %v90 = vrcp.pop %v89
    %s91 = vtos %v90
    %s92 = smul.f32 8.0, %s91
    %v93 = vstv %s92
    %v94 = vmul.f32 %v88, %v93
    %v95 = vadd.f32 %v87, %v94
    %v96 = vld [vmem:[#allocation10] sm:$0x1]
    %v97 = vadd.f32 %v96, %v84
    %v98 = vmul.f32 %v88, %v88
    %s99 = smul.f32 %s85, 8.0
    %v100 = vstv %s86
    %v101 = vrcp.pop %v100
    %s102 = vtos %v101
    %s103 = smul.f32 %s99, %s102
    %v104 = vstv %s103
    %v105 = vmul.f32 %v98, %v104
    %v106 = vadd.f32 %v97, %v105
    %s107 = sadd.s32 %s68, 7
    %p108 = scmp.gt.s32.totalorder %s107, 1
    %s109 = scalar_select %p108, %s107, 1
    %s110 = scvt.s32.f32 %s109
    %v111 = vstv %s110
    %v112 = vrcp.pop %v111
    %v113 = vmul.f32 %v106, %v112
    %v114 = vrsqrt.pop %v113
    %v115 = vmul.f32 %v113, %v114
    %vm116 = vcmp.eq.f32.partialorder %v113, inf
    %v117 = vsel %vm116, %v113, %v115
    %vm118 = vcmp.eq.f32.partialorder %v113, 0.0
    %v119 = vand.u32 %v113, 2147483648
    %v120 = vsel %vm118, %v119, %v117
    %v121 = vmax.f32 %v120, 0.01
    %v122 = vrcp.pop %v121
    %v123 = vsub.f32 0.0, %v95
    %v124 = vmul.f32 %v123, %v122
    %125 = vst [vmem:[#allocation12] sm:$0x1] %v95
    %126 = vst [vmem:[#allocation14] sm:$0x1] %v106
    %127 = vst [vmem:[#allocation15] sm:$0x1] %v113
    %128 = vst [vmem:[#allocation17] sm:$0x1] %v121
    %s129 = scalar_lea.smem [#allocation18], 0
    %130 = sst [smem:[%s129]] %s69
    %s131 = sld [smem:[#allocation3]]
    %p132 = scmp.le.s32.totalorder %s69, 1
    // Predicated region
    $region34: #{_normalizer_step.1} parent=1 // pred_check
      %p133 = pneg %p132
    $region35: #{_normalizer_step.1} parent=1 // pred_check_branch
      %135 = sbr.rel (%p133) target = $region37
    $region36: #{_normalizer_step.1} parent=1 // pred_region
      %136 = vst [vmem:[#allocation11] sm:$0xff] %v67
    $region37: #{_normalizer_step.1} parent=1 // pred_fallthru
      _
    %p137 = scmp.gt.s32.totalorder %s69, 1
    // Predicated region
    $region38: #{_normalizer_step.1} parent=1 // pred_check
      %p138 = pneg %p137
    $region39: #{_normalizer_step.1} parent=1 // pred_check_branch
      %140 = sbr.rel (%p138) target = $region41
    $region40: #{_normalizer_step.1} parent=1 // pred_region
      %v142 = vlaneseq
      %v143 = vshrl.u32 %v142, 7
      %v144 = vsub.s32 0, %v143
      %v145 = vrot.slane %v122, %v144
      %v147 = vmul.f32 %v67, %v145
      %v149 = vlaneseq
      %v150 = vshrl.u32 %v149, 7
      %v151 = vsub.s32 0, %v150
      %v152 = vrot.slane %v124, %v151
      %v154 = vadd.f32 %v147, %v152
      %s155 = ssub.f32 0.0, %s131
      %v156 = vstv %s155
      %v157 = vmax.f32 %v156, %v154
      %v158 = vstv %s131
      %v159 = vmin.f32 %v158, %v157
      %160 = vst [vmem:[#allocation11] sm:$0xff] %v159
    $region41: #{_normalizer_step.1} parent=1 // pred_fallthru
      _
    // Predicated region
    $region42: #{_normalizer_step.1} parent=1 // pred_check
      _
    $region43: #{_normalizer_step.1} parent=1 // pred_check_branch
      %162 = sbr.rel (0) target = $region45
    $region44: #{_normalizer_step.1} parent=1 // pred_region
      %s164 = ssub.s32 128, 128
      %165 = vsyncadd [#allocation6], %s164
      %s167 = sshll.u32 [#allocation11], 4
      %s168 = int_to_ptr.vmem [resolvable:$true] %s167
      %170 = dma.vmem_to_hbm [thread:$0]  %s168, 128, %s5, [#allocation6]
    $region45: #{_normalizer_step.1} parent=1 // pred_fallthru
      _
    // Predicated region
    $region46: #{_normalizer_step.1} parent=1 // pred_check
      _
    $region47: #{_normalizer_step.1} parent=1 // pred_check_branch
      %172 = sbr.rel (0) target = $region49
    $region48: #{_normalizer_step.1} parent=1 // pred_region
      %s174 = ssub.s32 16, 16
      %175 = vsyncadd [#allocation13], %s174
      %s177 = sshll.u32 [#allocation12], 4
      %s178 = int_to_ptr.vmem [resolvable:$true] %s177
      %180 = dma.vmem_to_hbm [thread:$0]  %s178, 16, %s6, [#allocation13]
    $region49: #{_normalizer_step.1} parent=1 // pred_fallthru
      _
    // Predicated region
    $region50: #{_normalizer_step.1} parent=1 // pred_check
      _
    $region51: #{_normalizer_step.1} parent=1 // pred_check_branch
      %182 = sbr.rel (0) target = $region53
    $region52: #{_normalizer_step.1} parent=1 // pred_region
      %s184 = ssub.s32 16, 16
      %185 = vsyncadd [#allocation13], %s184
      %s187 = sshll.u32 [#allocation14], 4
      %s188 = int_to_ptr.vmem [resolvable:$true] %s187
      %190 = dma.vmem_to_hbm [thread:$0]  %s188, 16, %s7, [#allocation13]
    $region53: #{_normalizer_step.1} parent=1 // pred_fallthru
      _
    // Predicated region
    $region54: #{_normalizer_step.1} parent=1 // pred_check
      _
    $region55: #{_normalizer_step.1} parent=1 // pred_check_branch
      %192 = sbr.rel (0) target = $region57
    $region56: #{_normalizer_step.1} parent=1 // pred_region
      %s194 = ssub.s32 16, 16
      %195 = vsyncadd [#allocation16], %s194
      %s197 = sshll.u32 [#allocation15], 4
      %s198 = int_to_ptr.vmem [resolvable:$true] %s197
      %200 = dma.vmem_to_hbm [thread:$0]  %s198, 16, %s8, [#allocation16]
    $region57: #{_normalizer_step.1} parent=1 // pred_fallthru
      _
    // Predicated region
    $region58: #{_normalizer_step.1} parent=1 // pred_check
      _
    $region59: #{_normalizer_step.1} parent=1 // pred_check_branch
      %202 = sbr.rel (0) target = $region61
    $region60: #{_normalizer_step.1} parent=1 // pred_region
      %s204 = ssub.s32 16, 16
      %205 = vsyncadd [#allocation16], %s204
      %s207 = sshll.u32 [#allocation17], 4
      %s208 = int_to_ptr.vmem [resolvable:$true] %s207
      %210 = dma.vmem_to_hbm [thread:$0]  %s208, 16, %s9, [#allocation16]
    $region61: #{_normalizer_step.1} parent=1 // pred_fallthru
      _
    // Predicated region
    $region62: #{_normalizer_step.1} parent=1 // pred_check
      _
    $region63: #{_normalizer_step.1} parent=1 // pred_check_branch
      %212 = sbr.rel (0) target = $region65
    $region64: #{_normalizer_step.1} parent=1 // pred_region
      %s214 = ssub.s32 16, 16
      %215 = vsyncadd [#allocation7], %s214
      %218 = dma.smem_to_hbm [#allocation18], 16, %s10, [#allocation7]
    $region65: #{_normalizer_step.1} parent=1 // pred_fallthru
      _
    // Predicated region
    $region66: #{_normalizer_step.1} parent=1 // pred_check
      _
    $region67: #{_normalizer_step.1} parent=1 // pred_check_branch
      %220 = sbr.rel (0) target = $region69
    $region68: #{_normalizer_step.1} parent=1 // pred_region
      %221 = dma.done [#allocation6], 128
    $region69: #{_normalizer_step.1} parent=1 // pred_fallthru
      _
    // Predicated region
    $region70: #{_normalizer_step.1} parent=1 // pred_check
      _
    $region71: #{_normalizer_step.1} parent=1 // pred_check_branch
      %223 = sbr.rel (0) target = $region73
    $region72: #{_normalizer_step.1} parent=1 // pred_region
      %224 = dma.done [#allocation13], 16
    $region73: #{_normalizer_step.1} parent=1 // pred_fallthru
      _
    // Predicated region
    $region74: #{_normalizer_step.1} parent=1 // pred_check
      _
    $region75: #{_normalizer_step.1} parent=1 // pred_check_branch
      %226 = sbr.rel (0) target = $region77
    $region76: #{_normalizer_step.1} parent=1 // pred_region
      %227 = dma.done [#allocation13], 16
    $region77: #{_normalizer_step.1} parent=1 // pred_fallthru
      _
    // Predicated region
    $region78: #{_normalizer_step.1} parent=1 // pred_check
      _
    $region79: #{_normalizer_step.1} parent=1 // pred_check_branch
      %229 = sbr.rel (0) target = $region81
    $region80: #{_normalizer_step.1} parent=1 // pred_region
      %230 = dma.done [#allocation16], 16
    $region81: #{_normalizer_step.1} parent=1 // pred_fallthru
      _
    // Predicated region
    $region82: #{_normalizer_step.1} parent=1 // pred_check
      _
    $region83: #{_normalizer_step.1} parent=1 // pred_check_branch
      %232 = sbr.rel (0) target = $region85
    $region84: #{_normalizer_step.1} parent=1 // pred_region
      %233 = dma.done [#allocation16], 16
    $region85: #{_normalizer_step.1} parent=1 // pred_fallthru
      _
    // Predicated region
    $region86: #{_normalizer_step.1} parent=1 // pred_check
      _
    $region87: #{_normalizer_step.1} parent=1 // pred_check_branch
      %235 = sbr.rel (0) target = $region89
    $region88: #{_normalizer_step.1} parent=1 // pred_region
      %236 = dma.done [#allocation7], 16
    $region89: #{_normalizer_step.1} parent=1 // pred_fallthru
      _
    %237 = sfence
    %238 = vsyncpa [#allocation5], 1
    %239 = vsyncpa [#allocation9], 1
    %240 = vsyncpa [#allocation6], 1
    %241 = vsyncpa [#allocation13], 1
    %242 = vsyncpa [#allocation16], 1
    %243 = vsyncpa [#allocation7], 1

</llo_original>
